<compile_context>
chip_gen: v7x
topology: tpu7x:2x2x1
jax: 0.10.0
libtpu: 0.0.40
codegen_flags: <defaults>
</compile_context>

<pallas_src>
import functools

import jax
import jax.numpy as jnp
from jax import lax
from jax.experimental import pallas as pl
from jax.experimental.pallas import tpu as pltpu

LN_EPS = 1e-5  # nn.LayerNorm default


def _round_up(n: int, m: int) -> int:
    return ((n + m - 1) // m) * m


def _encoder_kernel(x_ref, w1_ref, p_ref, w2_ref, o_ref, *, hidden_real: int):
    # One batch tile, whole Linear -> LayerNorm -> GELU -> Linear chain fused.
    x = x_ref[...]                           # (tm, Din_pad), original dtype
    w1 = w1_ref[...]                         # (Din_pad, H_pad)

    # Packed affine params (already f32): rows = [b1, gamma, beta, b2];
    # padded lanes are 0.
    p = p_ref[...]                           # (4, H_pad) f32
    b1 = p[0:1, :]
    gamma = p[1:2, :]
    beta = p[2:3, :]
    b2 = p[3:4, :]

    # Linear 1 on the MXU, f32 accumulation (no activation upcast beforehand).
    h = jnp.dot(x, w1, preferred_element_type=jnp.float32) + b1   # (tm, H_pad)

    h_pad = h.shape[-1]
    if hidden_real == h_pad:
        # Hidden dim is already lane-dense: plain LayerNorm.
        mean = jnp.mean(h, axis=-1, keepdims=True)
        centered = h - mean
        var = jnp.mean(centered * centered, axis=-1, keepdims=True)
    else:
        # Padded hidden columns of h are exactly 0 (zero-padded w1 cols / b1),
        # so sums over the padded row equal sums over the real row; normalize
        # by the REAL width and mask the centered values so variance is exact.
        lane = lax.broadcasted_iota(jnp.int32, (1, h_pad), 1)
        mask = lane < hidden_real
        inv_n = jnp.float32(1.0 / hidden_real)
        mean = jnp.sum(h, axis=-1, keepdims=True) * inv_n
        centered = jnp.where(mask, h - mean, 0.0)
        var = jnp.sum(centered * centered, axis=-1, keepdims=True) * inv_n

    hn = centered * lax.rsqrt(var + LN_EPS) * gamma + beta

    # Exact (erf-based) GELU, matching nn.GELU() default.  hn is 0 on padded
    # lanes (gamma/beta padded with 0), and GELU(0) == 0, so padding stays 0.
    ge = 0.5 * hn * (1.0 + lax.erf(hn * jnp.float32(0.7071067811865476)))

    # Linear 2 on the MXU; cast the activation to the weight dtype so bf16
    # weights take the full-rate MXU path (no-op for f32 weights).
    out = jnp.dot(ge.astype(w2_ref.dtype), w2_ref[...],
                  preferred_element_type=jnp.float32) + b2
    o_ref[...] = out.astype(o_ref.dtype)


@functools.partial(jax.jit, static_argnames=("block_m",))
def temporal_state_encoder(x, w1, b1, gamma, beta, w2, b2, *, block_m=256):
    """x: (..., input_dim) -> (..., hidden_dim)."""
    d_in = x.shape[-1]
    hidden = w1.shape[1]
    lead_shape = x.shape[:-1]

    # Flatten leading dims into one batch axis (nn.Linear acts on last dim).
    x2 = x.reshape(-1, d_in)
    B = x2.shape[0]

    # Lane-dense padding targets (last dim multiple of 128).
    d_in_p = _round_up(d_in, 128)
    h_p = _round_up(hidden, 128)

    # Batch tile: big by default (feeds the 128/256-wide MXU), clamped for
    # small batches; always a multiple of 8 sublanes.  Pad B to a tile
    # multiple instead of asserting divisibility.
    bm = max(8, min(block_m, _round_up(B, 8)))
    b_p = _round_up(B, bm)

    # Zero-pad everything.  Zero pad columns/rows/bias entries guarantee the
    # padded output columns are exactly 0 (sliced off below).
    xp = jnp.pad(x2, ((0, b_p - B), (0, d_in_p - d_in)))
    w1p = jnp.pad(w1, ((0, d_in_p - d_in), (0, h_p - hidden)))
    w2p = jnp.pad(w2, ((0, h_p - hidden), (0, h_p - hidden)))
    params = jnp.pad(
        jnp.stack([b1.astype(jnp.float32), gamma.astype(jnp.float32),
                   beta.astype(jnp.float32), b2.astype(jnp.float32)], axis=0),
        ((0, 0), (0, h_p - hidden)))                      # (4, H_pad) f32

    grid = (b_p // bm,)
    kernel = functools.partial(_encoder_kernel, hidden_real=hidden)

    out_padded = pl.pallas_call(
        kernel,
        out_shape=jax.ShapeDtypeStruct((b_p, h_p), x.dtype),
        grid_spec=pltpu.PrefetchScalarGridSpec(
            num_scalar_prefetch=0,
            grid=grid,
            in_specs=[
                pl.BlockSpec((bm, d_in_p), lambda i: (i, 0)),     # x tile
                pl.BlockSpec((d_in_p, h_p), lambda i: (0, 0)),    # w1 (resident)
                pl.BlockSpec((4, h_p), lambda i: (0, 0)),         # packed b1/g/b/b2
                pl.BlockSpec((h_p, h_p), lambda i: (0, 0)),       # w2 (resident)
            ],
            out_specs=pl.BlockSpec((bm, h_p), lambda i: (i, 0)),
        ),
        compiler_params=pltpu.CompilerParams(
            dimension_semantics=("parallel",),        # megacore-shardable batch
            vmem_limit_bytes=64 * 1024 * 1024,        # fits v7x per-TC VMEM
        ),
    )(xp, w1p, params, w2p)

    out = out_padded[:B, :hidden]
    return out.reshape(*lead_shape, hidden)


def _reference(x, w1, b1, gamma, beta, w2, b2):
    h = x @ w1 + b1
    mean = jnp.mean(h, axis=-1, keepdims=True)
    var = jnp.mean((h - mean) ** 2, axis=-1, keepdims=True)
    hn = (h - mean) / jnp.sqrt(var + LN_EPS) * gamma + beta
    ge = 0.5 * hn * (1.0 + lax.erf(hn / jnp.sqrt(2.0)))
    return ge @ w2 + b2


def _make_params(key, d_in, hidden):
    kw1, kb1, kw2, kb2 = jax.random.split(key, 4)
    lim1 = 1.0 / jnp.sqrt(d_in)
    w1 = jax.random.uniform(kw1, (d_in, hidden), jnp.float32, -lim1, lim1)
    b1 = jax.random.uniform(kb1, (hidden,), jnp.float32, -lim1, lim1)
    gamma = jnp.ones((hidden,), jnp.float32)
    beta = jnp.zeros((hidden,), jnp.float32)
    lim2 = 1.0 / jnp.sqrt(hidden)
    w2 = jax.random.uniform(kw2, (hidden, hidden), jnp.float32, -lim2, lim2)
    b2 = jax.random.uniform(kb2, (hidden,), jnp.float32, -lim2, lim2)
    return w1, b1, gamma, beta, w2, b2


if __name__ == "__main__":
    key = jax.random.PRNGKey(0)

    # (batch, input_dim, hidden_dim): exercise the masked-LN (padded hidden)
    # path, the lane-dense path, and a non-multiple-of-8 batch size.
    configs = [(8, 16, 32), (5, 24, 48), (16, 128, 128)]

    for batch, input_dim, hidden_dim in configs:
        key, kx, kp = jax.random.split(key, 3)
        x = jax.random.normal(kx, (batch, input_dim), dtype=jnp.float32)
        w1, b1, gamma, beta, w2, b2 = _make_params(kp, input_dim, hidden_dim)

        out = temporal_state_encoder(x, w1, b1, gamma, beta, w2, b2)
        out = jax.block_until_ready(out)

        ref = _reference(x, w1, b1, gamma, beta, w2, b2)
        assert out.shape == (batch, hidden_dim)
        assert jnp.allclose(out, ref, atol=1e-5, rtol=1e-5), (
            f"mismatch vs reference at shape {(batch, input_dim, hidden_dim)}")

    print("KERNEL_OK")
</pallas_src>

<mosaic_0001>
module attributes {stable_mosaic.version = 11 : i64} {
  func.func @_encoder_kernel(%arg0: i32, %arg1: memref<8x128xf32, #tpu.memory_space<vmem>>, %arg2: memref<128x128xf32, #tpu.memory_space<vmem>>, %arg3: memref<4x128xf32, #tpu.memory_space<vmem>>, %arg4: memref<128x128xf32, #tpu.memory_space<vmem>>, %arg5: memref<8x128xf32, #tpu.memory_space<vmem>>) attributes {dimension_semantics = [#tpu.dimension_semantics<parallel>], iteration_bounds = array<i64: 1>, scalar_prefetch = 0 : i64, scratch_operands = 0 : i64, tpu.core_type = #tpu.core_type<tc>, window_params = [{transform_indices = @transform_0, window_bounds = array<i64: 8, 128>}, {pipeline_mode = #tpu.pipeline_mode<synchronous>, transform_indices = @transform_1, window_bounds = array<i64: 128, 128>}, {pipeline_mode = #tpu.pipeline_mode<synchronous>, transform_indices = @transform_2, window_bounds = array<i64: 4, 128>}, {pipeline_mode = #tpu.pipeline_mode<synchronous>, transform_indices = @transform_3, window_bounds = array<i64: 128, 128>}, {transform_indices = @transform_4, window_bounds = array<i64: 8, 128>}]} {
    %c0 = arith.constant 0 : index
    %c0_0 = arith.constant 0 : index
    %0 = vector.load %arg1[%c0, %c0_0] : memref<8x128xf32, #tpu.memory_space<vmem>>, vector<8x128xf32>
    %c0_1 = arith.constant 0 : index
    %c0_2 = arith.constant 0 : index
    %1 = vector.load %arg2[%c0_1, %c0_2] : memref<128x128xf32, #tpu.memory_space<vmem>>, vector<128x128xf32>
    %c0_3 = arith.constant 0 : index
    %c0_4 = arith.constant 0 : index
    %2 = vector.load %arg3[%c0_3, %c0_4] : memref<4x128xf32, #tpu.memory_space<vmem>>, vector<4x128xf32>
    %3 = vector.extract_strided_slice %2 {offsets = [0, 0], sizes = [1, 128], strides = [1, 1]} : vector<4x128xf32> to vector<1x128xf32>
    %4 = vector.extract_strided_slice %2 {offsets = [1, 0], sizes = [1, 128], strides = [1, 1]} : vector<4x128xf32> to vector<1x128xf32>
    %5 = vector.extract_strided_slice %2 {offsets = [2, 0], sizes = [1, 128], strides = [1, 1]} : vector<4x128xf32> to vector<1x128xf32>
    %6 = vector.extract_strided_slice %2 {offsets = [3, 0], sizes = [1, 128], strides = [1, 1]} : vector<4x128xf32> to vector<1x128xf32>
    %cst = arith.constant dense<0.000000e+00> : vector<8x128xf32>
    %7 = tpu.matmul %0, %1, %cst {dimension_numbers = #tpu.dot_dimension_numbers<[1], [0], [0], [1], [0, 0, 1, 1], [], []>} : vector<8x128xf32>, vector<128x128xf32>, vector<8x128xf32> -> vector<8x128xf32>
    %8 = vector.broadcast %3 : vector<1x128xf32> to vector<8x128xf32>
    %9 = arith.addf %7, %8 : vector<8x128xf32>
    %10 = tpu.iota {dimensions = array<i32: 1>} : vector<1x128xi32>
    %c32_i32 = arith.constant 32 : i32
    %11 = vector.broadcast %c32_i32 : i32 to vector<1x128xi32>
    %12 = arith.cmpi slt, %10, %11 : vector<1x128xi32>
    %cst_5 = arith.constant dense<0.000000e+00> : vector<8xf32>
    %13 = vector.multi_reduction <add>, %9, %cst_5 [1] : vector<8x128xf32> to vector<8xf32>
    %14 = vector.shape_cast %13 : vector<8xf32> to vector<8x1xf32>
    %cst_6 = arith.constant 3.125000e-02 : f32
    %15 = vector.broadcast %cst_6 : f32 to vector<8x1xf32>
    %16 = arith.mulf %14, %15 : vector<8x1xf32>
    %17 = vector.broadcast %16 : vector<8x1xf32> to vector<8x128xf32>
    %18 = arith.subf %9, %17 : vector<8x128xf32>
    %cst_7 = arith.constant 0.000000e+00 : f32
    %19 = vector.shape_cast %12 : vector<1x128xi1> to vector<1x128xi1>
    %20 = vector.broadcast %19 : vector<1x128xi1> to vector<8x128xi1>
    %21 = vector.broadcast %cst_7 : f32 to vector<8x128xf32>
    %22 = arith.select %20, %18, %21 : vector<8x128xi1>, vector<8x128xf32>
    %23 = arith.mulf %22, %22 : vector<8x128xf32>
    %cst_8 = arith.constant dense<0.000000e+00> : vector<8xf32>
    %24 = vector.multi_reduction <add>, %23, %cst_8 [1] : vector<8x128xf32> to vector<8xf32>
    %25 = vector.shape_cast %24 : vector<8xf32> to vector<8x1xf32>
    %cst_9 = arith.constant 3.125000e-02 : f32
    %26 = vector.broadcast %cst_9 : f32 to vector<8x1xf32>
    %27 = arith.mulf %25, %26 : vector<8x1xf32>
    %cst_10 = arith.constant 9.99999974E-6 : f32
    %28 = vector.broadcast %cst_10 : f32 to vector<8x1xf32>
    %29 = arith.addf %27, %28 : vector<8x1xf32>
    %30 = math.rsqrt %29 : vector<8x1xf32>
    %31 = vector.broadcast %30 : vector<8x1xf32> to vector<8x128xf32>
    %32 = arith.mulf %22, %31 : vector<8x128xf32>
    %33 = vector.broadcast %4 : vector<1x128xf32> to vector<8x128xf32>
    %34 = arith.mulf %32, %33 : vector<8x128xf32>
    %35 = vector.broadcast %5 : vector<1x128xf32> to vector<8x128xf32>
    %36 = arith.addf %34, %35 : vector<8x128xf32>
    %cst_11 = arith.constant 5.000000e-01 : f32
    %37 = vector.broadcast %cst_11 : f32 to vector<8x128xf32>
    %38 = arith.mulf %37, %36 : vector<8x128xf32>
    %cst_12 = arith.constant 0.707106769 : f32
    %39 = vector.broadcast %cst_12 : f32 to vector<8x128xf32>
    %40 = arith.mulf %36, %39 : vector<8x128xf32>
    %41 = math.erf %40 : vector<8x128xf32>
    %cst_13 = arith.constant 1.000000e+00 : f32
    %42 = vector.broadcast %cst_13 : f32 to vector<8x128xf32>
    %43 = arith.addf %42, %41 : vector<8x128xf32>
    %44 = arith.mulf %38, %43 : vector<8x128xf32>
    %c0_14 = arith.constant 0 : index
    %c0_15 = arith.constant 0 : index
    %45 = vector.load %arg4[%c0_14, %c0_15] : memref<128x128xf32, #tpu.memory_space<vmem>>, vector<128x128xf32>
    %cst_16 = arith.constant dense<0.000000e+00> : vector<8x128xf32>
    %46 = tpu.matmul %44, %45, %cst_16 {dimension_numbers = #tpu.dot_dimension_numbers<[1], [0], [0], [1], [0, 0, 1, 1], [], []>} : vector<8x128xf32>, vector<128x128xf32>, vector<8x128xf32> -> vector<8x128xf32>
    %47 = vector.broadcast %6 : vector<1x128xf32> to vector<8x128xf32>
    %48 = arith.addf %46, %47 : vector<8x128xf32>
    %c0_17 = arith.constant 0 : index
    %c0_18 = arith.constant 0 : index
    %49 = vector.load %arg5[%c0_17, %c0_18] : memref<8x128xf32, #tpu.memory_space<vmem>>, vector<8x128xf32>
    tpu.vector_store %arg5[%c0_17, %c0_18], %48 {strides = array<i32>} : memref<8x128xf32, #tpu.memory_space<vmem>>, vector<8x128xf32>,
    return
  }
  func.func @transform_0(%arg0: i32) -> (i32, i32) {
    %c0_i32 = arith.constant 0 : i32
    %c0_i32_0 = arith.constant 0 : i32
    return %arg0, %c0_i32 : i32, i32
  }
  func.func @transform_1(%arg0: i32) -> (i32, i32) {
    %c0_i32 = arith.constant 0 : i32
    %c0_i32_0 = arith.constant 0 : i32
    %c0_i32_1 = arith.constant 0 : i32
    return %c0_i32, %c0_i32_0 : i32, i32
  }
  func.func @transform_2(%arg0: i32) -> (i32, i32) {
    %c0_i32 = arith.constant 0 : i32
    %c0_i32_0 = arith.constant 0 : i32
    %c0_i32_1 = arith.constant 0 : i32
    return %c0_i32, %c0_i32_0 : i32, i32
  }
  func.func @transform_3(%arg0: i32) -> (i32, i32) {
    %c0_i32 = arith.constant 0 : i32
    %c0_i32_0 = arith.constant 0 : i32
    %c0_i32_1 = arith.constant 0 : i32
    return %c0_i32, %c0_i32_0 : i32, i32
  }
  func.func @transform_4(%arg0: i32) -> (i32, i32) {
    %c0_i32 = arith.constant 0 : i32
    %c0_i32_0 = arith.constant 0 : i32
    return %arg0, %c0_i32 : i32, i32
  }
}

</mosaic_0001>

<llo_original>
// kernel: temporal_state_encoder.1
$region0: #{temporal_state_encoder.1}
  #allocation0 [shape = 'u32[]', space=smem, size = 0x4, offset = 0x4, fixed_abs, tag = 'smem constant byte address 0x4 - core index']
  #allocation1 [shape = 'u32[144,128]{1,0:T(1,128)}', space=vmem, size = 0x12000, scoped, tag = 'internal scratch']
  %s0 = inlined_call_operand.hbm [shape: f32[8,128], index: 0, kind: input, shape index: {}]
  %s1 = inlined_call_operand.hbm [shape: f32[128,128], index: 1, kind: input, shape index: {}]
  %s2 = inlined_call_operand.hbm [shape: f32[4,128], index: 2, kind: input, shape index: {}]
  %s3 = inlined_call_operand.hbm [shape: f32[128,128], index: 3, kind: input, shape index: {}]
  %s4 = inlined_call_operand.hbm [shape: f32[8,128], index: 4, kind: output, shape index: {}]
  %s5 = sld [smem:[#allocation0]]
  $region42: #{temporal_state_encoder.1} parent=0
    _
  %s7 = ssub.s32 1, %s5
  %s8 = scalar_select 0, %s7, %s5
  $region1: #{temporal_state_encoder.1} parent=0
    #allocation2 [shape = 'u8[4096]{0}', space=vmem, size = 0x1000, scoped, tag = 'input window, operand 0, single buffered']
    #allocation3 [shape = 's32[1]{0}', space=sflag, size = 0x4, scoped, tag = 'scoped memory for temporal_state_encoder.1']
    #allocation4 [shape = 's32[1]{0}', space=sflag, size = 0x4, scoped, tag = 'scoped memory for temporal_state_encoder.1']
    #allocation5 [shape = 'u8[65536]{0}', space=vmem, size = 0x10000, scoped, tag = 'input window, operand 1, single buffered']
    #allocation6 [shape = 's32[1]{0}', space=sflag, size = 0x4, scoped, tag = 'scoped memory for temporal_state_encoder.1']
    #allocation7 [shape = 'u8[2048]{0}', space=vmem, size = 0x800, scoped, tag = 'input window, operand 2, single buffered']
    #allocation8 [shape = 'u8[65536]{0}', space=vmem, size = 0x10000, scoped, tag = 'input window, operand 3, single buffered']
    #allocation9 [shape = 's32[1]{0}', space=sflag, size = 0x4, scoped, tag = 'scoped memory for temporal_state_encoder.1']
    #allocation10 [shape = 'u8[4096]{0}', space=vmem, size = 0x1000, scoped, tag = 'output window, operand 0, single buffered']
    %9 = vsyncpa [#allocation3], 0
    %10 = vsyncpa [#allocation6], 0
    %11 = vsyncpa [#allocation9], 0
    %12 = vsyncpa [#allocation4], 0
    // Predicated region
    $region2: #{temporal_state_encoder.1} parent=1 // pred_check
      _
    $region3: #{temporal_state_encoder.1} parent=1 // pred_check_branch
      %14 = sbr.rel (0) target = $region5
    $region4: #{temporal_state_encoder.1} parent=1 // pred_region
      %s16 = ssub.s32 128, 128
      %17 = vsyncadd [#allocation3], %s16
      %s19 = sshll.u32 [#allocation2], 4
      %s20 = int_to_ptr.vmem [resolvable:$true] %s19
      %22 = dma.hbm_to_vmem [thread:$0]  %s0, 128, %s20, [#allocation3]
    $region5: #{temporal_state_encoder.1} parent=1 // pred_fallthru
      _
    // Predicated region
    $region6: #{temporal_state_encoder.1} parent=1 // pred_check
      _
    $region7: #{temporal_state_encoder.1} parent=1 // pred_check_branch
      %24 = sbr.rel (0) target = $region9
    $region8: #{temporal_state_encoder.1} parent=1 // pred_region
      %s26 = ssub.s32 2048, 2048
      %27 = vsyncadd [#allocation6], %s26
      %s28 = sshll.u32 [#allocation5], 4
      %s29 = int_to_ptr.vmem [resolvable:$true] %s28
      %34 = dma.hbm_to_vmem [thread:$0]  %s1, 2048, %s29, [#allocation6], 128, 128, 8
    $region9: #{temporal_state_encoder.1} parent=1 // pred_fallthru
      _
    // Predicated region
    $region10: #{temporal_state_encoder.1} parent=1 // pred_check
      _
    $region11: #{temporal_state_encoder.1} parent=1 // pred_check_branch
      %36 = sbr.rel (0) target = $region13
    $region12: #{temporal_state_encoder.1} parent=1 // pred_region
      %s38 = ssub.s32 64, 64
      %39 = vsyncadd [#allocation6], %s38
      %s41 = sshll.u32 [#allocation7], 4
      %s42 = int_to_ptr.vmem [resolvable:$true] %s41
      %44 = dma.hbm_to_vmem [thread:$0]  %s2, 64, %s42, [#allocation6]
    $region13: #{temporal_state_encoder.1} parent=1 // pred_fallthru
      _
    // Predicated region
    $region14: #{temporal_state_encoder.1} parent=1 // pred_check
      _
    $region15: #{temporal_state_encoder.1} parent=1 // pred_check_branch
      %46 = sbr.rel (0) target = $region17
    $region16: #{temporal_state_encoder.1} parent=1 // pred_region
      %s48 = ssub.s32 2048, 2048
      %49 = vsyncadd [#allocation9], %s48
      %s50 = sshll.u32 [#allocation8], 4
      %s51 = int_to_ptr.vmem [resolvable:$true] %s50
      %56 = dma.hbm_to_vmem [thread:$0]  %s3, 2048, %s51, [#allocation9], 128, 128, 8
    $region17: #{temporal_state_encoder.1} parent=1 // pred_fallthru
      _
    // Predicated region
    $region18: #{temporal_state_encoder.1} parent=1 // pred_check
      _
    $region19: #{temporal_state_encoder.1} parent=1 // pred_check_branch
      %58 = sbr.rel (0) target = $region21
    $region20: #{temporal_state_encoder.1} parent=1 // pred_region
      %59 = dma.done [#allocation3], 128
    $region21: #{temporal_state_encoder.1} parent=1 // pred_fallthru
      _
    // Predicated region
    $region22: #{temporal_state_encoder.1} parent=1 // pred_check
      _
    $region23: #{temporal_state_encoder.1} parent=1 // pred_check_branch
      %61 = sbr.rel (0) target = $region25
    $region24: #{temporal_state_encoder.1} parent=1 // pred_region
      %62 = dma.done [#allocation6], 2048
    $region25: #{temporal_state_encoder.1} parent=1 // pred_fallthru
      _
    // Predicated region
    $region26: #{temporal_state_encoder.1} parent=1 // pred_check
      _
    $region27: #{temporal_state_encoder.1} parent=1 // pred_check_branch
      %64 = sbr.rel (0) target = $region29
    $region28: #{temporal_state_encoder.1} parent=1 // pred_region
      %65 = dma.done [#allocation6], 64
    $region29: #{temporal_state_encoder.1} parent=1 // pred_fallthru
      _
    // Predicated region
    $region30: #{temporal_state_encoder.1} parent=1 // pred_check
      _
    $region31: #{temporal_state_encoder.1} parent=1 // pred_check_branch
      %67 = sbr.rel (0) target = $region33
    $region32: #{temporal_state_encoder.1} parent=1 // pred_region
      %68 = dma.done [#allocation9], 2048
    $region33: #{temporal_state_encoder.1} parent=1 // pred_fallthru
      _
    %v69 = vld [vmem:[#allocation2] sm:$0xff]
    %v70 = vld [vmem:[#allocation5] sm:$0xff]
    %v71 = vld [vmem:[#allocation5 + $0x8] sm:$0xff]
    %v72 = vld [vmem:[#allocation5 + $0x10] sm:$0xff]
    %v73 = vld [vmem:[#allocation5 + $0x18] sm:$0xff]
    %v74 = vld [vmem:[#allocation5 + $0x20] sm:$0xff]
    %v75 = vld [vmem:[#allocation5 + $0x28] sm:$0xff]
    %v76 = vld [vmem:[#allocation5 + $0x30] sm:$0xff]
    %v77 = vld [vmem:[#allocation5 + $0x38] sm:$0xff]
    %v78 = vld [vmem:[#allocation5 + $0x40] sm:$0xff]
    %v79 = vld [vmem:[#allocation5 + $0x48] sm:$0xff]
    %v80 = vld [vmem:[#allocation5 + $0x50] sm:$0xff]
    %v81 = vld [vmem:[#allocation5 + $0x58] sm:$0xff]
    %v82 = vld [vmem:[#allocation5 + $0x60] sm:$0xff]
    %v83 = vld [vmem:[#allocation5 + $0x68] sm:$0xff]
    %v84 = vld [vmem:[#allocation5 + $0x70] sm:$0xff]
    %v85 = vld [vmem:[#allocation5 + $0x78] sm:$0xff]
    %v86 = vld [vmem:[#allocation7] sm:$0xf]
    %v87 = vlaneseq
    %v88 = vshrl.u32 %v87, 7
    %v89 = vsub.s32 0, %v88
    %v90 = vrot.slane %v86, %v89
    %91 = vmatprep.subr.mxu0 0.0
    %92 = vmatpush1.msra.mxu0 %v70
    %93 = vmatprep.subr.mxu0 0.0
    %94 = vmatpush1.msra.mxu0 %v71
    %95 = vmatprep.subr.mxu0 0.0
    %96 = vmatpush1.msra.mxu0 %v72
    %97 = vmatprep.subr.mxu0 0.0
    %98 = vmatpush1.msra.mxu0 %v73
    %99 = vmatprep.subr.mxu0 0.0
    %100 = vmatpush1.msra.mxu0 %v74
    %101 = vmatprep.subr.mxu0 0.0
    %102 = vmatpush1.msra.mxu0 %v75
    %103 = vmatprep.subr.mxu0 0.0
    %104 = vmatpush1.msra.mxu0 %v76
    %105 = vmatprep.subr.mxu0 0.0
    %106 = vmatpush1.msra.mxu0 %v77
    %107 = vmatprep.subr.mxu0 0.0
    %108 = vmatpush1.msra.mxu0 %v78
    %109 = vmatprep.subr.mxu0 0.0
    %110 = vmatpush1.msra.mxu0 %v79
    %111 = vmatprep.subr.mxu0 0.0
    %112 = vmatpush1.msra.mxu0 %v80
    %113 = vmatprep.subr.mxu0 0.0
    %114 = vmatpush1.msra.mxu0 %v81
    %115 = vmatprep.subr.mxu0 0.0
    %116 = vmatpush1.msra.mxu0 %v82
    %117 = vmatprep.subr.mxu0 0.0
    %118 = vmatpush1.msra.mxu0 %v83
    %119 = vmatprep.subr.mxu0 0.0
    %120 = vmatpush1.msra.mxu0 %v84
    %121 = vmatprep.subr.mxu0 0.0
    %122 = vmatpush1.msra.mxu0 %v85
    %123 = vmatprep.subr.mxu0 0.0
    %124 = vmatpush1.msra.mxu0 0.0
    %125 = vmatprep.subr.mxu0 0.0
    %126 = vmatpush1.msra.mxu0 0.0
    %127 = vmatprep.subr.mxu0 0.0
    %128 = vmatpush1.msra.mxu0 0.0
    %129 = vmatprep.subr.mxu0 0.0
    %130 = vmatpush1.msra.mxu0 0.0
    %131 = vmatprep.subr.mxu0 0.0
    %132 = vmatpush1.msra.mxu0 0.0
    %133 = vmatprep.subr.mxu0 0.0
    %134 = vmatpush1.msra.mxu0 0.0
    %135 = vmatprep.subr.mxu0 0.0
    %136 = vmatpush1.msra.mxu0 0.0
    %137 = vmatprep.subr.mxu0 0.0
    %138 = vmatpush1.msra.mxu0 0.0
    %139 = vmatprep.subr.mxu0 0.0
    %140 = vmatpush1.msra.mxu0 0.0
    %141 = vmatprep.subr.mxu0 0.0
    %142 = vmatpush1.msra.mxu0 0.0
    %143 = vmatprep.subr.mxu0 0.0
    %144 = vmatpush1.msra.mxu0 0.0
    %145 = vmatprep.subr.mxu0 0.0
    %146 = vmatpush1.msra.mxu0 0.0
    %147 = vmatprep.subr.mxu0 0.0
    %148 = vmatpush1.msra.mxu0 0.0
    %149 = vmatprep.subr.mxu0 0.0
    %150 = vmatpush1.msra.mxu0 0.0
    %151 = vmatprep.subr.mxu0 0.0
    %152 = vmatpush1.msra.mxu0 0.0
    %153 = vmatprep.subr.mxu0 0.0
    %154 = vmatpush1.msra.mxu0 0.0
    %155 = vmatprep.mubr.f32.mxu0 0.0
    %156 = vmatmul.mubr.f32.gmra.mrb[0].mxu0 %v69
    %v157 = vpop.f32.mrb[0].mxu0
    %v158 = vadd.f32 %v90, %v157
    %v159 = vpop.f32.mrb[0].mxu0
    %160 = vdwg.mxu0
    %v161 = vlaneseq
    %v162 = vand.u32 %v161, 127
    %vm163 = vcmp.lt.s32.totalorder %v162, 32
    %164 = vadd.xlane.f32.xlu0 %v158
    %v165 = vpop.xlane.xlu0 %164
    %v166 = vmul.f32 %v165, 0.03125
    %v167 = vsub.f32 %v158, %v166
    %v168 = vsel %vm163, 1, 0
    %vm169 = vcmp.eq.s32.totalorder %v168, 1
    %v170 = vsel %vm169, %v167, 0.0
    %v171 = vmul.f32 %v170, %v170
    %172 = vadd.xlane.f32.xlu0 %v171
    %v173 = vpop.xlane.xlu0 %172
    %v174 = vmul.f32 %v173, 0.03125
    %v175 = vadd.f32 %v174, 1e-05
    %v176 = vrsqrt.pop %v175
    %v177 = vmul.f32 %v170, %v176
    %v178 = vlaneseq
    %v179 = vshrl.u32 %v178, 7
    %v180 = vsub.s32 1, %v179
    %v181 = vrot.slane %v86, %v180
    %v182 = vmul.f32 %v177, %v181
    %v183 = vlaneseq
    %v184 = vshrl.u32 %v183, 7
    %v185 = vsub.s32 2, %v184
    %v186 = vrot.slane %v86, %v185
    %v187 = vadd.f32 %v182, %v186
    %v188 = vmul.f32 %v187, 0.5
    %v189 = vmul.f32 %v187, 0.70710677
    %v190 = verf.f32.pop %v189
    %v191 = vadd.f32 %v190, 1.0
    %v192 = vmul.f32 %v188, %v191
    %v193 = vld [vmem:[#allocation8] sm:$0xff]
    %v194 = vld [vmem:[#allocation8 + $0x8] sm:$0xff]
    %v195 = vld [vmem:[#allocation8 + $0x10] sm:$0xff]
    %v196 = vld [vmem:[#allocation8 + $0x18] sm:$0xff]
    %v197 = vld [vmem:[#allocation8 + $0x20] sm:$0xff]
    %v198 = vld [vmem:[#allocation8 + $0x28] sm:$0xff]
    %v199 = vld [vmem:[#allocation8 + $0x30] sm:$0xff]
    %v200 = vld [vmem:[#allocation8 + $0x38] sm:$0xff]
    %v201 = vld [vmem:[#allocation8 + $0x40] sm:$0xff]
    %v202 = vld [vmem:[#allocation8 + $0x48] sm:$0xff]
    %v203 = vld [vmem:[#allocation8 + $0x50] sm:$0xff]
    %v204 = vld [vmem:[#allocation8 + $0x58] sm:$0xff]
    %v205 = vld [vmem:[#allocation8 + $0x60] sm:$0xff]
    %v206 = vld [vmem:[#allocation8 + $0x68] sm:$0xff]
    %v207 = vld [vmem:[#allocation8 + $0x70] sm:$0xff]
    %v208 = vld [vmem:[#allocation8 + $0x78] sm:$0xff]
    %v209 = vlaneseq
    %v210 = vshrl.u32 %v209, 7
    %v211 = vsub.s32 3, %v210
    %v212 = vrot.slane %v86, %v211
    %213 = vmatprep.subr.mxu0 0.0
    %214 = vmatpush1.msra.mxu0 %v193
    %215 = vmatprep.subr.mxu0 0.0
    %216 = vmatpush1.msra.mxu0 %v194
    %217 = vmatprep.subr.mxu0 0.0
    %218 = vmatpush1.msra.mxu0 %v195
    %219 = vmatprep.subr.mxu0 0.0
    %220 = vmatpush1.msra.mxu0 %v196
    %221 = vmatprep.subr.mxu0 0.0
    %222 = vmatpush1.msra.mxu0 %v197
    %223 = vmatprep.subr.mxu0 0.0
    %224 = vmatpush1.msra.mxu0 %v198
    %225 = vmatprep.subr.mxu0 0.0
    %226 = vmatpush1.msra.mxu0 %v199
    %227 = vmatprep.subr.mxu0 0.0
    %228 = vmatpush1.msra.mxu0 %v200
    %229 = vmatprep.subr.mxu0 0.0
    %230 = vmatpush1.msra.mxu0 %v201
    %231 = vmatprep.subr.mxu0 0.0
    %232 = vmatpush1.msra.mxu0 %v202
    %233 = vmatprep.subr.mxu0 0.0
    %234 = vmatpush1.msra.mxu0 %v203
    %235 = vmatprep.subr.mxu0 0.0
    %236 = vmatpush1.msra.mxu0 %v204
    %237 = vmatprep.subr.mxu0 0.0
    %238 = vmatpush1.msra.mxu0 %v205
    %239 = vmatprep.subr.mxu0 0.0
    %240 = vmatpush1.msra.mxu0 %v206
    %241 = vmatprep.subr.mxu0 0.0
    %242 = vmatpush1.msra.mxu0 %v207
    %243 = vmatprep.subr.mxu0 0.0
    %244 = vmatpush1.msra.mxu0 %v208
    %245 = vmatprep.subr.mxu0 0.0
    %246 = vmatpush1.msra.mxu0 0.0
    %247 = vmatprep.subr.mxu0 0.0
    %248 = vmatpush1.msra.mxu0 0.0
    %249 = vmatprep.subr.mxu0 0.0
    %250 = vmatpush1.msra.mxu0 0.0
    %251 = vmatprep.subr.mxu0 0.0
    %252 = vmatpush1.msra.mxu0 0.0
    %253 = vmatprep.subr.mxu0 0.0
    %254 = vmatpush1.msra.mxu0 0.0
    %255 = vmatprep.subr.mxu0 0.0
    %256 = vmatpush1.msra.mxu0 0.0
    %257 = vmatprep.subr.mxu0 0.0
    %258 = vmatpush1.msra.mxu0 0.0
    %259 = vmatprep.subr.mxu0 0.0
    %260 = vmatpush1.msra.mxu0 0.0
    %261 = vmatprep.subr.mxu0 0.0
    %262 = vmatpush1.msra.mxu0 0.0
    %263 = vmatprep.subr.mxu0 0.0
    %264 = vmatpush1.msra.mxu0 0.0
    %265 = vmatprep.subr.mxu0 0.0
    %266 = vmatpush1.msra.mxu0 0.0
    %267 = vmatprep.subr.mxu0 0.0
    %268 = vmatpush1.msra.mxu0 0.0
    %269 = vmatprep.subr.mxu0 0.0
    %270 = vmatpush1.msra.mxu0 0.0
    %271 = vmatprep.subr.mxu0 0.0
    %272 = vmatpush1.msra.mxu0 0.0
    %273 = vmatprep.subr.mxu0 0.0
    %274 = vmatpush1.msra.mxu0 0.0
    %275 = vmatprep.subr.mxu0 0.0
    %276 = vmatpush1.msra.mxu0 0.0
    %277 = vmatprep.mubr.f32.mxu0 0.0
    %278 = vmatmul.mubr.f32.gmra.mrb[0].mxu0 %v192
    %v279 = vpop.f32.mrb[0].mxu0
    %v280 = vadd.f32 %v212, %v279
    %v281 = vpop.f32.mrb[0].mxu0
    %282 = vdwg.mxu0
    %283 = vst [vmem:[#allocation10] sm:$0xff] %v280
    // Predicated region
    $region34: #{temporal_state_encoder.1} parent=1 // pred_check
      _
    $region35: #{temporal_state_encoder.1} parent=1 // pred_check_branch
      %285 = sbr.rel (0) target = $region37
    $region36: #{temporal_state_encoder.1} parent=1 // pred_region
      %s287 = ssub.s32 128, 128
      %288 = vsyncadd [#allocation4], %s287
      %s290 = sshll.u32 [#allocation10], 4
      %s291 = int_to_ptr.vmem [resolvable:$true] %s290
      %293 = dma.vmem_to_hbm [thread:$0]  %s291, 128, %s4, [#allocation4]
    $region37: #{temporal_state_encoder.1} parent=1 // pred_fallthru
      _
    // Predicated region
    $region38: #{temporal_state_encoder.1} parent=1 // pred_check
      _
    $region39: #{temporal_state_encoder.1} parent=1 // pred_check_branch
      %295 = sbr.rel (0) target = $region41
    $region40: #{temporal_state_encoder.1} parent=1 // pred_region
      %296 = dma.done [#allocation4], 128
    $region41: #{temporal_state_encoder.1} parent=1 // pred_fallthru
      _
    %297 = vsyncpa [#allocation3], 1
    %298 = vsyncpa [#allocation6], 1
    %299 = vsyncpa [#allocation9], 1
    %300 = vsyncpa [#allocation4], 1

</llo_original>
